<compile_context>
chip_gen: v5e
topology: v5e:2x2
jax: 0.10.0
libtpu: 0.0.40
codegen_flags: <defaults>
</compile_context>

<pallas_src>
import functools

import jax
import jax.numpy as jnp
from jax import lax
from jax.experimental import pallas as pl
from jax.experimental.pallas import tpu as pltpu


def _charbonnier_kernel(x_ref, y_ref, o_ref, acc_ref, *,
                        eps, n_valid, steps_per_core):
    p = pl.program_id(0)          # core-split axis (size 1 on single-TC chips)
    i = pl.program_id(1)          # sequential reduction axis

    @pl.when(i == 0)
    def _init():
        acc_ref[...] = jnp.zeros_like(acc_ref)

    tm, L = x_ref.shape
    row0 = (p * steps_per_core + i) * tm          # global row of this tile

    d = x_ref[...].astype(jnp.float32) - y_ref[...].astype(jnp.float32)
    v = jnp.sqrt(d * d + eps)     # eps is a Python float -> literal, no capture

    sub, lanes = acc_ref.shape

    def _accumulate(vals):
        # (tm, L) -> (tm//sub, sub, L) is layout-preserving; summing the
        # leading axis is plain vreg-wise VPU adds (no per-step XLU reduce
        # and no serialized scalar read-modify-write).
        acc_ref[...] += vals.reshape(-1, sub, lanes).sum(axis=0)

    block_end = (row0 + tm) * L                   # scalar, exclusive

    @pl.when(block_end <= n_valid)                # fully in-bounds tile
    def _full():
        _accumulate(v)

    @pl.when(block_end > n_valid)                 # ragged tail tile: mask
    def _tail():
        rid = lax.broadcasted_iota(jnp.int32, (tm, L), 0)
        cid = lax.broadcasted_iota(jnp.int32, (tm, L), 1)
        flat = (row0 + rid) * L + cid             # global element index
        _accumulate(jnp.where(flat < n_valid, v, 0.0))

    @pl.when(i == pl.num_programs(1) - 1)
    def _finalize():
        # Single cross-lane/sublane reduce per core, only at the very end.
        o_ref[...] = jnp.sum(acc_ref[...]).reshape(1, 1, 1)


def charbonnier_loss(x, y, eps=1e-06, *, block_bytes=4 * 1024 * 1024,
                     num_cores=1):
    """x, y: arrays of identical shape (any rank/dtype). Returns scalar f32 loss.

    block_bytes: per-input per-step DMA volume (4 MiB default; use 8 MiB on v7x).
    num_cores:   set to 2 on v7x to shard the reduction across both TensorCores.
    """
    assert x.shape == y.shape
    n = int(x.size)
    if n == 0:
        return jnp.float32(0.0)

    itemsize = jnp.dtype(x.dtype).itemsize
    xf = x.reshape(-1)                    # contiguous -> free bitcast, no copy
    yf = y.reshape(-1)

    # Lane-dense last dim: largest of {1024, 512, 256, 128} dividing n, so the
    # (rows, L) reshape is also a free bitcast (no wrapper-side pad / copy).
    L = next((c for c in (1024, 512, 256, 128) if n % c == 0), None)
    if L is None:
        # Rare (numel not a multiple of 128): pad by < 128 elements; the
        # padded elements are masked out in-kernel (flat index >= n), so no
        # correction term is needed.
        # TODO(synk): this fallback still materializes one copy of the inputs;
        # it is only hit when numel % 128 != 0.
        L = 128
        pad = (-n) % L
        xf = jnp.pad(xf, (0, pad))
        yf = jnp.pad(yf, (0, pad))

    rows = xf.size // L
    x2 = xf.reshape(rows, L)
    y2 = yf.reshape(rows, L)

    # Rows per tile from a byte budget so bytes/step is dtype-independent
    # (bf16 gets 2x the rows of f32).  Multiple of 8 (sublane tiling), clamped
    # so we never allocate a tile much larger than the array itself.
    if rows < 8:
        tm = rows                                  # block == full array dim
    else:
        tm = max(8, (block_bytes // (L * itemsize)) // 8 * 8)
        tm = min(tm, pl.cdiv(rows, 8) * 8)
    sub = 8 if tm % 8 == 0 else tm

    P = max(1, int(num_cores))
    blocks = pl.cdiv(rows, tm)
    npc = pl.cdiv(blocks, P)                       # reduction steps per core

    if P > 1:
        # True per-TensorCore sharding (v7x); plain "parallel" does not split.
        dim_sem = (pltpu.CORE_PARALLEL, pltpu.ARBITRARY)
    else:
        dim_sem = ("arbitrary", "arbitrary")

    in_spec = pl.BlockSpec((tm, L), lambda p, i: (p * npc + i, 0))
    out_spec = pl.BlockSpec((1, 1, 1), lambda p, i: (p, 0, 0))

    out = pl.pallas_call(
        functools.partial(_charbonnier_kernel, eps=float(eps), n_valid=n,
                          steps_per_core=npc),
        out_shape=jax.ShapeDtypeStruct((P, 1, 1), jnp.float32),
        grid_spec=pltpu.PrefetchScalarGridSpec(
            num_scalar_prefetch=0,
            grid=(P, npc),
            in_specs=[in_spec, in_spec],
            out_specs=out_spec,
            scratch_shapes=[pltpu.VMEM((sub, L), jnp.float32)],
        ),
        compiler_params=pltpu.CompilerParams(
            dimension_semantics=dim_sem,
            # 2 inputs x 2 buffers x tile (<= 8 MiB) + scratch fits under this
            # on all of v5e/v6e/v7x.  If exposed DMA remains on v7x, consider
            # pipeline_mode=pl.Buffered(3) on the two input specs.
            vmem_limit_bytes=48 * 1024 * 1024,
        ),
        cost_estimate=pl.CostEstimate(
            flops=3 * n,
            transcendentals=n,
            bytes_accessed=2 * n * itemsize,
        ),
    )(x2, y2)

    return jnp.sum(out)


if __name__ == "__main__":
    key = jax.random.PRNGKey(0)
    eps = 1e-06

    def ref_loss(a, b):
        d = a.astype(jnp.float32) - b.astype(jnp.float32)
        return jnp.sum(jnp.sqrt(d * d + eps))

    k0, k1, k2, k3 = jax.random.split(key, 4)

    # 1) Aligned case: NCHW (2, 4, 16, 16), numel divisible by 1024.
    x = jax.random.normal(k0, (2, 4, 16, 16), dtype=jnp.float32)
    y = jax.random.normal(k1, (2, 4, 16, 16), dtype=jnp.float32)
    loss = charbonnier_loss(x, y, eps)
    jax.block_until_ready(loss)
    ref = ref_loss(x, y)
    assert jnp.allclose(loss, ref, rtol=1e-4, atol=1e-3), (loss, ref)

    # 2) Ragged case (rows not a multiple of the row tile): exercises the
    #    in-kernel tail masking path.
    xr = jax.random.normal(k2, (2, 3, 24, 40), dtype=jnp.float32)
    yr = jax.random.normal(k3, (2, 3, 24, 40), dtype=jnp.float32)
    loss_r = charbonnier_loss(xr, yr, eps)
    jax.block_until_ready(loss_r)
    ref_r = ref_loss(xr, yr)
    assert jnp.allclose(loss_r, ref_r, rtol=1e-4, atol=1e-3), (loss_r, ref_r)

    # 3) bf16 inputs: native-dtype DMA, f32 accumulate in-register.
    xb = x.astype(jnp.bfloat16)
    yb = y.astype(jnp.bfloat16)
    loss_b = charbonnier_loss(xb, yb, eps)
    jax.block_until_ready(loss_b)
    ref_b = ref_loss(xb, yb)
    assert jnp.allclose(loss_b, ref_b, rtol=1e-3, atol=1e-2), (loss_b, ref_b)

    print("KERNEL_OK")
</pallas_src>

<mosaic_0001>
module attributes {stable_mosaic.version = 11 : i64} {
  func.func @_charbonnier_kernel(%arg0: i32, %arg1: i32, %arg2: memref<2x1024xf32, #tpu.memory_space<vmem>>, %arg3: memref<2x1024xf32, #tpu.memory_space<vmem>>, %arg4: memref<1x1x1xf32, #tpu.memory_space<vmem>>, %arg5: memref<2x1024xf32, #tpu.memory_space<vmem>>) attributes {dimension_semantics = [#tpu.dimension_semantics<arbitrary>, #tpu.dimension_semantics<arbitrary>], iteration_bounds = array<i64: 1, 1>, scalar_prefetch = 0 : i64, scratch_operands = 1 : i64, tpu.core_type = #tpu.core_type<tc>, window_params = [{transform_indices = @transform_0, window_bounds = array<i64: 2, 1024>}, {transform_indices = @transform_1, window_bounds = array<i64: 2, 1024>}, {transform_indices = @transform_2, window_bounds = array<i64: 1, 1, 1>}]} {
    %c0_i32 = arith.constant 0 : i32
    %0 = arith.cmpi eq, %arg1, %c0_i32 : i32
    %1 = arith.extui %0 : i1 to i32
    %c0_i32_0 = arith.constant 0 : i32
    %2 = arith.cmpi ne, %1, %c0_i32_0 : i32
    scf.if %2 {
      %cst_10 = arith.constant 0.000000e+00 : f32
      %24 = vector.broadcast %cst_10 : f32 to vector<2x1024xf32>
      %c0_11 = arith.constant 0 : index
      %c0_12 = arith.constant 0 : index
      %25 = vector.load %arg5[%c0_11, %c0_12] : memref<2x1024xf32, #tpu.memory_space<vmem>>, vector<2x1024xf32>
      tpu.vector_store %arg5[%c0_11, %c0_12], %24 {strides = array<i32>} : memref<2x1024xf32, #tpu.memory_space<vmem>>, vector<2x1024xf32>,
    } else {
    }
    %c1_i32 = arith.constant 1 : i32
    %3 = arith.muli %arg0, %c1_i32 : i32
    %4 = arith.addi %3, %arg1 : i32
    %c2_i32 = arith.constant 2 : i32
    %5 = arith.muli %4, %c2_i32 : i32
    %c0 = arith.constant 0 : index
    %c0_1 = arith.constant 0 : index
    %6 = vector.load %arg2[%c0, %c0_1] : memref<2x1024xf32, #tpu.memory_space<vmem>>, vector<2x1024xf32>
    %c0_2 = arith.constant 0 : index
    %c0_3 = arith.constant 0 : index
    %7 = vector.load %arg3[%c0_2, %c0_3] : memref<2x1024xf32, #tpu.memory_space<vmem>>, vector<2x1024xf32>
    %8 = arith.subf %6, %7 : vector<2x1024xf32>
    %9 = arith.mulf %8, %8 : vector<2x1024xf32>
    %cst = arith.constant 9.99999997E-7 : f32
    %10 = vector.broadcast %cst : f32 to vector<2x1024xf32>
    %11 = arith.addf %9, %10 : vector<2x1024xf32>
    %12 = math.sqrt %11 : vector<2x1024xf32>
    %c2_i32_4 = arith.constant 2 : i32
    %13 = arith.addi %5, %c2_i32_4 : i32
    %c1024_i32 = arith.constant 1024 : i32
    %14 = arith.muli %13, %c1024_i32 : i32
    %c2048_i32 = arith.constant 2048 : i32
    %15 = arith.cmpi sle, %14, %c2048_i32 : i32
    %16 = arith.extui %15 : i1 to i32
    %c0_i32_5 = arith.constant 0 : i32
    %17 = arith.cmpi ne, %16, %c0_i32_5 : i32
    scf.if %17 {
      %c0_10 = arith.constant 0 : index
      %c0_11 = arith.constant 0 : index
      %24 = vector.load %arg5[%c0_10, %c0_11] : memref<2x1024xf32, #tpu.memory_space<vmem>>, vector<2x1024xf32>
      %25 = vector.shape_cast %12 : vector<2x1024xf32> to vector<1x2x1024xf32>
      %cst_12 = arith.constant dense<0.000000e+00> : vector<2x1024xf32>
      %26 = vector.multi_reduction <add>, %25, %cst_12 [0] : vector<1x2x1024xf32> to vector<2x1024xf32>
      %27 = arith.addf %24, %26 : vector<2x1024xf32>
      %c0_13 = arith.constant 0 : index
      %c0_14 = arith.constant 0 : index
      %28 = vector.load %arg5[%c0_13, %c0_14] : memref<2x1024xf32, #tpu.memory_space<vmem>>, vector<2x1024xf32>
      tpu.vector_store %arg5[%c0_13, %c0_14], %27 {strides = array<i32>} : memref<2x1024xf32, #tpu.memory_space<vmem>>, vector<2x1024xf32>,
    } else {
    }
    %c2048_i32_6 = arith.constant 2048 : i32
    %18 = arith.cmpi sgt, %14, %c2048_i32_6 : i32
    %19 = arith.extui %18 : i1 to i32
    %c0_i32_7 = arith.constant 0 : i32
    %20 = arith.cmpi ne, %19, %c0_i32_7 : i32
    scf.if %20 {
      %24 = tpu.iota {dimensions = array<i32: 0>} : vector<2x1024xi32>
      %25 = tpu.iota {dimensions = array<i32: 1>} : vector<2x1024xi32>
      %26 = vector.broadcast %5 : i32 to vector<2x1024xi32>
      %27 = arith.addi %26, %24 : vector<2x1024xi32>
      %c1024_i32_10 = arith.constant 1024 : i32
      %28 = vector.broadcast %c1024_i32_10 : i32 to vector<2x1024xi32>
      %29 = arith.muli %27, %28 : vector<2x1024xi32>
      %30 = arith.addi %29, %25 : vector<2x1024xi32>
      %c2048_i32_11 = arith.constant 2048 : i32
      %31 = vector.broadcast %c2048_i32_11 : i32 to vector<2x1024xi32>
      %32 = arith.cmpi slt, %30, %31 : vector<2x1024xi32>
      %cst_12 = arith.constant 0.000000e+00 : f32
      %33 = vector.broadcast %cst_12 : f32 to vector<2x1024xf32>
      %34 = arith.select %32, %12, %33 : vector<2x1024xi1>, vector<2x1024xf32>
      %c0_13 = arith.constant 0 : index
      %c0_14 = arith.constant 0 : index
      %35 = vector.load %arg5[%c0_13, %c0_14] : memref<2x1024xf32, #tpu.memory_space<vmem>>, vector<2x1024xf32>
      %36 = vector.shape_cast %34 : vector<2x1024xf32> to vector<1x2x1024xf32>
      %cst_15 = arith.constant dense<0.000000e+00> : vector<2x1024xf32>
      %37 = vector.multi_reduction <add>, %36, %cst_15 [0] : vector<1x2x1024xf32> to vector<2x1024xf32>
      %38 = arith.addf %35, %37 : vector<2x1024xf32>
      %c0_16 = arith.constant 0 : index
      %c0_17 = arith.constant 0 : index
      %39 = vector.load %arg5[%c0_16, %c0_17] : memref<2x1024xf32, #tpu.memory_space<vmem>>, vector<2x1024xf32>
      tpu.vector_store %arg5[%c0_16, %c0_17], %38 {strides = array<i32>} : memref<2x1024xf32, #tpu.memory_space<vmem>>, vector<2x1024xf32>,
    } else {
    }
    %c0_i32_8 = arith.constant 0 : i32
    %21 = arith.cmpi eq, %arg1, %c0_i32_8 : i32
    %22 = arith.extui %21 : i1 to i32
    %c0_i32_9 = arith.constant 0 : i32
    %23 = arith.cmpi ne, %22, %c0_i32_9 : i32
    scf.if %23 {
      %c0_10 = arith.constant 0 : index
      %c0_11 = arith.constant 0 : index
      %24 = vector.load %arg5[%c0_10, %c0_11] : memref<2x1024xf32, #tpu.memory_space<vmem>>, vector<2x1024xf32>
      %25 = vector.shape_cast %24 : vector<2x1024xf32> to vector<1x2x1024xf32>
      %cst_12 = arith.constant dense<0.000000e+00> : vector<1xf32>
      %26 = vector.multi_reduction <add>, %25, %cst_12 [1, 2] : vector<1x2x1024xf32> to vector<1xf32>
      %27 = vector.shape_cast %26 : vector<1xf32> to vector<1x1x1xf32>
      %28 = vector.extract %27[0, 0, 0] : f32 from vector<1x1x1xf32>
      %29 = vector.broadcast %28 : f32 to vector<1x1x1xf32>
      %c0_13 = arith.constant 0 : index
      %c0_14 = arith.constant 0 : index
      %c0_15 = arith.constant 0 : index
      %30 = vector.load %arg4[%c0_13, %c0_14, %c0_15] : memref<1x1x1xf32, #tpu.memory_space<vmem>>, vector<1x1x1xf32>
      tpu.vector_store %arg4[%c0_13, %c0_14, %c0_15], %29 {strides = array<i32>} : memref<1x1x1xf32, #tpu.memory_space<vmem>>, vector<1x1x1xf32>,
    } else {
    }
    return
  }
  func.func @transform_0(%arg0: i32, %arg1: i32) -> (i32, i32) {
    %c1_i32 = arith.constant 1 : i32
    %0 = arith.muli %arg0, %c1_i32 : i32
    %1 = arith.addi %0, %arg1 : i32
    %c0_i32 = arith.constant 0 : i32
    %c0_i32_0 = arith.constant 0 : i32
    return %1, %c0_i32 : i32, i32
  }
  func.func @transform_1(%arg0: i32, %arg1: i32) -> (i32, i32) {
    %c1_i32 = arith.constant 1 : i32
    %0 = arith.muli %arg0, %c1_i32 : i32
    %1 = arith.addi %0, %arg1 : i32
    %c0_i32 = arith.constant 0 : i32
    %c0_i32_0 = arith.constant 0 : i32
    return %1, %c0_i32 : i32, i32
  }
  func.func @transform_2(%arg0: i32, %arg1: i32) -> (i32, i32, i32) {
    %c0_i32 = arith.constant 0 : i32
    %c0_i32_0 = arith.constant 0 : i32
    %c0_i32_1 = arith.constant 0 : i32
    return %arg0, %c0_i32, %c0_i32_0 : i32, i32, i32
  }
}

</mosaic_0001>

<llo_original>
// kernel: tpu_custom_call.1
$region0: #{tpu_custom_call.1}
  #allocation0 [shape = 'u32[]', space=smem, size = 0x4, offset = 0x4, fixed_abs, tag = 'smem constant byte address 0x4 - core index']
  #allocation1 [shape = 'u32[72,128]{1,0:T(1,128)}', space=vmem, size = 0x9000, scoped, tag = 'internal scratch']
  #allocation2 [shape = 'f32[2,1024]{1,0:T(2,128)}', space=vmem, size = 0x2000, scoped, tag = 'scratch operand']
  %s0 = inlined_call_operand.hbm [shape: f32[2,1024], index: 0, kind: input, shape index: {}]
  %s1 = inlined_call_operand.hbm [shape: f32[2,1024], index: 1, kind: input, shape index: {}]
  %s2 = inlined_call_operand.hbm [shape: f32[1,1,1], index: 2, kind: output, shape index: {}]
  %s3 = sld [smem:[#allocation0]]
  $region42: #{tpu_custom_call.1} parent=0
    _
  %s5 = ssub.s32 1, %s3
  %s6 = scalar_select 0, %s5, %s3
  $region1: #{tpu_custom_call.1} parent=0
    #allocation3 [shape = 'u8[8192]{0}', space=vmem, size = 0x2000, scoped, tag = 'input window, operand 0, single buffered']
    #allocation4 [shape = 's32[1]{0}', space=sflag, size = 0x4, scoped, tag = 'scoped memory for tpu_custom_call.1']
    #allocation5 [shape = 's32[1]{0}', space=sflag, size = 0x4, scoped, tag = 'scoped memory for tpu_custom_call.1']
    #allocation6 [shape = 'u8[8192]{0}', space=vmem, size = 0x2000, scoped, tag = 'input window, operand 1, single buffered']
    #allocation7 [shape = 's32[1]{0}', space=sflag, size = 0x4, scoped, tag = 'scoped memory for tpu_custom_call.1']
    #allocation8 [shape = 'u8[512]{0}', space=vmem, size = 0x400, scoped, tag = 'output window, operand 0, single buffered']
    %7 = vsyncpa [#allocation4], 0
    %8 = vsyncpa [#allocation7], 0
    %9 = vsyncpa [#allocation5], 0
    // Predicated region
    $region2: #{tpu_custom_call.1} parent=1 // pred_check
      _
    $region3: #{tpu_custom_call.1} parent=1 // pred_check_branch
      %11 = sbr.rel (0) target = $region5
    $region4: #{tpu_custom_call.1} parent=1 // pred_region
      %s12 = sadd.s32 0, 0
      %14 = vsyncadd [#allocation4], 0
      %s15 = smul.addr %s12, 8
      %s16 = smul.addr %s15, 2
      %s17 = scalar_lea.hbm %s0, %s16
      %s19 = sshll.u32 %s17, 4
      %s20 = int_to_ptr.hbm [resolvable:$true] %s19
      %s21 = sshll.u32 [#allocation3], 4
      %s22 = int_to_ptr.vmem [resolvable:$true] %s21
      %24 = dma.hbm_to_vmem [thread:$0]  %s20, 256, %s22, [#allocation4]
    $region5: #{tpu_custom_call.1} parent=1 // pred_fallthru
      _
    // Predicated region
    $region6: #{tpu_custom_call.1} parent=1 // pred_check
      _
    $region7: #{tpu_custom_call.1} parent=1 // pred_check_branch
      %26 = sbr.rel (0) target = $region9
    $region8: #{tpu_custom_call.1} parent=1 // pred_region
      %s27 = sadd.s32 0, 0
      %29 = vsyncadd [#allocation7], 0
      %s30 = smul.addr %s27, 8
      %s31 = smul.addr %s30, 2
      %s32 = scalar_lea.hbm %s1, %s31
      %s34 = sshll.u32 %s32, 4
      %s35 = int_to_ptr.hbm [resolvable:$true] %s34
      %s36 = sshll.u32 [#allocation6], 4
      %s37 = int_to_ptr.vmem [resolvable:$true] %s36
      %39 = dma.hbm_to_vmem [thread:$0]  %s35, 256, %s37, [#allocation7]
    $region9: #{tpu_custom_call.1} parent=1 // pred_fallthru
      _
    // Predicated region
    $region10: #{tpu_custom_call.1} parent=1 // pred_check
      _
    $region11: #{tpu_custom_call.1} parent=1 // pred_check_branch
      %41 = sbr.rel (0) target = $region13
    $region12: #{tpu_custom_call.1} parent=1 // pred_region
      %43 = dma.done [#allocation4], 256
    $region13: #{tpu_custom_call.1} parent=1 // pred_fallthru
      _
    // Predicated region
    $region14: #{tpu_custom_call.1} parent=1 // pred_check
      _
    $region15: #{tpu_custom_call.1} parent=1 // pred_check_branch
      %45 = sbr.rel (0) target = $region17
    $region16: #{tpu_custom_call.1} parent=1 // pred_region
      %47 = dma.done [#allocation7], 256
    $region17: #{tpu_custom_call.1} parent=1 // pred_fallthru
      _
    %s48 = sadd.s32 0, 0
    %s49 = sadd.s32 0, 0
    %p50 = scmp.eq.s32.totalorder 0, 0
    // Predicated region
    $region18: #{tpu_custom_call.1} parent=1 // pred_check
      %p51 = pneg %p50
    $region19: #{tpu_custom_call.1} parent=1 // pred_check_branch
      %53 = sbr.rel (%p51) target = $region21
    $region20: #{tpu_custom_call.1} parent=1 // pred_region
      %54 = vst [vmem:[#allocation2] sm:$0xff] 0.0
      %55 = vst [vmem:[#allocation2 + $0x8] sm:$0xff] 0.0
    $region21: #{tpu_custom_call.1} parent=1 // pred_fallthru
      _
    %s56 = sadd.s32 0, 0
    %s57 = smul.u32 %s56, 2
    %v58 = vld [vmem:[#allocation3] sm:$0xff]
    %v59 = vld [vmem:[#allocation3 + $0x8] sm:$0xff]
    %v60 = vld [vmem:[#allocation6] sm:$0xff]
    %v61 = vld [vmem:[#allocation6 + $0x8] sm:$0xff]
    %v62 = vsub.f32 %v58, %v60
    %v63 = vsub.f32 %v59, %v61
    %v64 = vmul.f32 %v62, %v62
    %v65 = vmul.f32 %v63, %v63
    %v66 = vadd.f32 %v64, 1e-06
    %v67 = vadd.f32 %v65, 1e-06
    %v68 = vrsqrt.pop %v66
    %v69 = vmul.f32 %v68, %v66
    %v70 = vmul.f32 %v69, %v68
    %v71 = vmul.f32 0.5, %v70
    %v72 = vsub.f32 1.5, %v71
    %v73 = vmul.f32 %v68, %v72
    %v74 = vmul.f32 %v66, %v73
    %vm75 = vcmp.eq.f32.partialorder %v66, inf
    %v76 = vsel %vm75, %v66, %v74
    %vm77 = vcmp.eq.f32.partialorder %v66, 0.0
    %v78 = vand.u32 %v66, 2147483648
    %v79 = vsel %vm77, %v78, %v76
    %v80 = vrsqrt.pop %v67
    %v81 = vmul.f32 %v80, %v67
    %v82 = vmul.f32 %v81, %v80
    %v83 = vmul.f32 0.5, %v82
    %v84 = vsub.f32 1.5, %v83
    %v85 = vmul.f32 %v80, %v84
    %v86 = vmul.f32 %v67, %v85
    %vm87 = vcmp.eq.f32.partialorder %v67, inf
    %v88 = vsel %vm87, %v67, %v86
    %vm89 = vcmp.eq.f32.partialorder %v67, 0.0
    %v90 = vand.u32 %v67, 2147483648
    %v91 = vsel %vm89, %v90, %v88
    %s92 = sadd.s32 %s57, 2
    %s93 = smul.u32 %s92, 1024
    %p94 = scmp.le.s32.totalorder %s93, 2048
    // Predicated region
    $region22: #{tpu_custom_call.1} parent=1 // pred_check
      %p95 = pneg %p94
    $region23: #{tpu_custom_call.1} parent=1 // pred_check_branch
      %97 = sbr.rel (%p95) target = $region25
    $region24: #{tpu_custom_call.1} parent=1 // pred_region
      %v98 = vld [vmem:[#allocation2] sm:$0xff]
      %v99 = vld [vmem:[#allocation2 + $0x8] sm:$0xff]
      %v100 = vadd.f32 %v79, 0.0
      %v101 = vadd.f32 %v91, 0.0
      %v102 = vadd.f32 %v98, %v100
      %v103 = vadd.f32 %v99, %v101
      %104 = vst [vmem:[#allocation2] sm:$0xff] %v102
      %105 = vst [vmem:[#allocation2 + $0x8] sm:$0xff] %v103
    $region25: #{tpu_custom_call.1} parent=1 // pred_fallthru
      _
    %p106 = scmp.gt.s32.totalorder %s93, 2048
    // Predicated region
    $region26: #{tpu_custom_call.1} parent=1 // pred_check
      %p107 = pneg %p106
    $region27: #{tpu_custom_call.1} parent=1 // pred_check_branch
      %109 = sbr.rel (%p107) target = $region29
    $region28: #{tpu_custom_call.1} parent=1 // pred_region
      %v110 = vlaneseq
      %v111 = vshrl.u32 %v110, 7
      %v112 = vlaneseq
      %v113 = vand.u32 %v112, 127
      %v114 = vadd.s32 %v113, 128
      %v115 = vadd.s32 %v113, 256
      %v116 = vadd.s32 %v113, 384
      %v117 = vadd.s32 %v113, 512
      %v118 = vadd.s32 %v113, 640
      %v119 = vadd.s32 %v113, 768
      %v120 = vadd.s32 %v113, 896
      %v121 = vstv %s57
      %v122 = vadd.s32 %v121, %v111
      %v123 = vmul.u32 %v122, 1024
      %v124 = vadd.s32 %v123, %v113
      %v125 = vadd.s32 %v123, %v114
      %v126 = vadd.s32 %v123, %v115
      %v127 = vadd.s32 %v123, %v116
      %v128 = vadd.s32 %v123, %v117
      %v129 = vadd.s32 %v123, %v118
      %v130 = vadd.s32 %v123, %v119
      %v131 = vadd.s32 %v123, %v120
      %vm132 = vcmp.lt.s32.totalorder %v124, 2048
      %vm133 = vcmp.lt.s32.totalorder %v125, 2048
      %vm134 = vcmp.lt.s32.totalorder %v126, 2048
      %vm135 = vcmp.lt.s32.totalorder %v127, 2048
      %vm136 = vcmp.lt.s32.totalorder %v128, 2048
      %vm137 = vcmp.lt.s32.totalorder %v129, 2048
      %vm138 = vcmp.lt.s32.totalorder %v130, 2048
      %vm139 = vcmp.lt.s32.totalorder %v131, 2048
      %142 = vst [vmem:[#allocation1] ss:$4 sm:$0xff] %v79
      %s143 = scalar_lea.vmem [#allocation1], 32
      %144 = vst [vmem:[%s143] ss:$4 sm:$0xff] %v91
      %v145 = vld.sshfl [vmem:[#allocation1] sm:$0xff pattern:$0x73625140]
      %v146 = vld.sshfl [vmem:[#allocation1 + $0x8] sm:$0xff pattern:$0x73625140]
      %v147 = vld.sshfl [vmem:[#allocation1 + $0x10] sm:$0xff pattern:$0x73625140]
      %v148 = vld.sshfl [vmem:[#allocation1 + $0x18] sm:$0xff pattern:$0x73625140]
      %v149 = vld.sshfl [vmem:[#allocation1 + $0x20] sm:$0xff pattern:$0x73625140]
      %v150 = vld.sshfl [vmem:[#allocation1 + $0x28] sm:$0xff pattern:$0x73625140]
      %v151 = vld.sshfl [vmem:[#allocation1 + $0x30] sm:$0xff pattern:$0x73625140]
      %v152 = vld.sshfl [vmem:[#allocation1 + $0x38] sm:$0xff pattern:$0x73625140]
      %v161 = vsel %vm132, %v145, 0.0
      %v162 = vsel %vm133, %v146, 0.0
      %v163 = vsel %vm134, %v147, 0.0
      %v164 = vsel %vm135, %v148, 0.0
      %v165 = vsel %vm136, %v149, 0.0
      %v166 = vsel %vm137, %v150, 0.0
      %v167 = vsel %vm138, %v151, 0.0
      %v168 = vsel %vm139, %v152, 0.0
      %v169 = vld [vmem:[#allocation2] sm:$0xff]
      %v170 = vld [vmem:[#allocation2 + $0x8] sm:$0xff]
      %v171 = vadd.f32 %v161, 0.0
      %v172 = vadd.f32 %v162, 0.0
      %v173 = vadd.f32 %v163, 0.0
      %v174 = vadd.f32 %v164, 0.0
      %v175 = vadd.f32 %v165, 0.0
      %v176 = vadd.f32 %v166, 0.0
      %v177 = vadd.f32 %v167, 0.0
      %v178 = vadd.f32 %v168, 0.0
      %v187 = vrot.slane %v172, 6
      %v188 = vrot.slane %v173, 4
      %v189 = vrot.slane %v174, 2
      %v190 = vrot.slane %v176, 6
      %v191 = vrot.slane %v177, 4
      %v192 = vrot.slane %v178, 2
      %vm193 = vcmask 1041408
      %v194 = vsel %vm193, %v171, %v187
      %vm195 = vcmask 1045508
      %v196 = vsel %vm195, %v188, %v189
      %vm197 = vcmask 1043456
      %v198 = vsel %vm197, %v194, %v196
      %v199 = vsel %vm193, %v175, %v190
      %v200 = vsel %vm195, %v191, %v192
      %v201 = vsel %vm197, %v199, %v200
      %v204 = vadd.f32 %v169, %v198
      %v205 = vadd.f32 %v170, %v201
      %206 = vst [vmem:[#allocation2] sm:$0xff] %v204
      %207 = vst [vmem:[#allocation2 + $0x8] sm:$0xff] %v205
    $region29: #{tpu_custom_call.1} parent=1 // pred_fallthru
      _
    // Predicated region
    $region30: #{tpu_custom_call.1} parent=1 // pred_check
      %p208 = pneg %p50
    $region31: #{tpu_custom_call.1} parent=1 // pred_check_branch
      %210 = sbr.rel (%p208) target = $region33
    $region32: #{tpu_custom_call.1} parent=1 // pred_region
      %v211 = vld [vmem:[#allocation2] sm:$0xff]
      %v212 = vld [vmem:[#allocation2 + $0x8] sm:$0xff]
      %215 = vst [vmem:[#allocation1] ss:$4 sm:$0xff] %v211
      %s216 = scalar_lea.vmem [#allocation1], 32
      %217 = vst [vmem:[%s216] ss:$4 sm:$0xff] %v212
      %v218 = vld.sshfl [vmem:[#allocation1] sm:$0xff pattern:$0x73625140]
      %v219 = vld.sshfl [vmem:[#allocation1 + $0x8] sm:$0xff pattern:$0x73625140]
      %v220 = vld.sshfl [vmem:[#allocation1 + $0x10] sm:$0xff pattern:$0x73625140]
      %v221 = vld.sshfl [vmem:[#allocation1 + $0x18] sm:$0xff pattern:$0x73625140]
      %v222 = vld.sshfl [vmem:[#allocation1 + $0x20] sm:$0xff pattern:$0x73625140]
      %v223 = vld.sshfl [vmem:[#allocation1 + $0x28] sm:$0xff pattern:$0x73625140]
      %v224 = vld.sshfl [vmem:[#allocation1 + $0x30] sm:$0xff pattern:$0x73625140]
      %v225 = vld.sshfl [vmem:[#allocation1 + $0x38] sm:$0xff pattern:$0x73625140]
      %vm234 = vcmask 1041408
      %v235 = vsel %vm234, %v218, 0.0
      %v236 = vsel %vm234, %v219, 0.0
      %v237 = vadd.f32 %v235, %v236
      %v238 = vsel %vm234, %v220, 0.0
      %v239 = vadd.f32 %v237, %v238
      %v240 = vsel %vm234, %v221, 0.0
      %v241 = vadd.f32 %v239, %v240
      %v242 = vsel %vm234, %v222, 0.0
      %v243 = vadd.f32 %v241, %v242
      %v244 = vsel %vm234, %v223, 0.0
      %v245 = vadd.f32 %v243, %v244
      %v246 = vsel %vm234, %v224, 0.0
      %v247 = vadd.f32 %v245, %v246
      %v248 = vsel %vm234, %v225, 0.0
      %v249 = vadd.f32 %v247, %v248
      %250 = vadd.xlane.f32.xlu0 %v249
      %v251 = vpop.xlane.xlu0 %250
      %v252 = vrot.slane %v251, 4
      %v253 = vadd.f32 %v251, %v252
      %v254 = vrot.slane %v253, 2
      %v255 = vadd.f32 %v253, %v254
      %v256 = vrot.slane %v255, 1
      %v257 = vadd.f32 %v255, %v256
      %s258 = vtos %v257
      %v259 = vstv %s258
      %vm260 = vcmask 0
      %261 = vst.msk [vmem:[#allocation8] sm:$0x1] %vm260, %v259
    $region33: #{tpu_custom_call.1} parent=1 // pred_fallthru
      _
    // Predicated region
    $region34: #{tpu_custom_call.1} parent=1 // pred_check
      _
    $region35: #{tpu_custom_call.1} parent=1 // pred_check_branch
      %263 = sbr.rel (0) target = $region37
    $region36: #{tpu_custom_call.1} parent=1 // pred_region
      %265 = vsyncadd [#allocation5], 0
      %s267 = sshll.u32 [#allocation8], 4
      %s268 = int_to_ptr.vmem [resolvable:$true] %s267
      %s269 = sshll.u32 %s2, 4
      %s270 = int_to_ptr.hbm [resolvable:$true] %s269
      %272 = dma.vmem_to_hbm [thread:$0]  %s268, 16, %s270, [#allocation5]
    $region37: #{tpu_custom_call.1} parent=1 // pred_fallthru
      _
    // Predicated region
    $region38: #{tpu_custom_call.1} parent=1 // pred_check
      _
    $region39: #{tpu_custom_call.1} parent=1 // pred_check_branch
      %274 = sbr.rel (0) target = $region41
    $region40: #{tpu_custom_call.1} parent=1 // pred_region
      %276 = dma.done [#allocation5], 16
    $region41: #{tpu_custom_call.1} parent=1 // pred_fallthru
      _
    %277 = vsyncpa [#allocation4], 1
    %278 = vsyncpa [#allocation7], 1
    %279 = vsyncpa [#allocation5], 1

</llo_original>
